<compile_context>
chip_gen: v7x
topology: tpu7x:2x2x1
jax: 0.10.0
libtpu: 0.0.40
codegen_flags: <defaults>
</compile_context>

<pallas_src>
import jax
import jax.numpy as jnp
from jax.experimental import pallas as pl
from jax.experimental.pallas import tpu as pltpu  # noqa: F401  (TPU backend)


def _reg_l1_kernel(pred_ref,     # VMEM (B, K*C) f32  gathered predictions
                   target_ref,   # VMEM (B, K*C) f32
                   mask_ref,     # VMEM (B, K*C) f32  mask pre-expanded over C
                   loss_ref):    # VMEM (1, 1)   f32  scalar loss output
    pred = pred_ref[...]
    tgt = target_ref[...]
    m = mask_ref[...]

    # mask is 0/1, so |pred*m - tgt*m| == |pred - tgt| * m  (one fewer multiply).
    diff = jnp.abs(pred - tgt) * m
    num = jnp.sum(diff, keepdims=True)      # (1, 1)
    den = jnp.sum(m, keepdims=True)         # (1, 1)  == mask.sum() over (B,K,C)
    loss_ref[...] = num / (den + jnp.float32(1e-4))


def reg_l1_loss(output, mask, ind, target):
    """output: (B, C, H, W); mask: (B, K); ind: (B, K) int; target: (B, K, C)."""
    B, C, H, W = output.shape
    K = ind.shape[1]
    HW = H * W

    # Glue: NCHW -> (B, H*W, C); gather only the K indexed rows here (B*K*C
    # floats) instead of shipping the whole feature map into the kernel.
    feat = jnp.transpose(output, (0, 2, 3, 1)).reshape(B, HW, C)
    pred = jnp.take_along_axis(feat, ind[..., None].astype(jnp.int32), axis=1)  # (B,K,C)

    # Lane-dense flattened layout for the kernel.
    pred_flat = pred.reshape(B, K * C).astype(jnp.float32)
    target_flat = target.reshape(B, K * C).astype(jnp.float32)
    # Expanded mask: element (k, c) -> flat index k*C + c, i.e. repeat along C.
    mask_flat = jnp.repeat(mask.astype(jnp.float32), C, axis=1)                 # (B,K*C)

    loss = pl.pallas_call(
        _reg_l1_kernel,
        out_shape=jax.ShapeDtypeStruct((1, 1), jnp.float32),
        # No grid: a single step over full-array VMEM blocks (B*K*C is tiny).
    )(pred_flat, target_flat, mask_flat)
    return loss[0, 0]


def reg_l1_loss_ref(output, mask, ind, target):
    """Pure-JAX reference mirroring the PyTorch module."""
    B, C, H, W = output.shape
    feat = jnp.transpose(output, (0, 2, 3, 1)).reshape(B, H * W, C)
    pred = jnp.take_along_axis(feat, ind[..., None].astype(jnp.int32), axis=1)
    m = mask.astype(jnp.float32)[..., None]
    m = jnp.broadcast_to(m, pred.shape)
    loss = jnp.sum(jnp.abs(pred * m - target * m))
    return loss / (jnp.sum(m) + 1e-4)


if __name__ == "__main__":
    B, C, H, W, K = 2, 4, 16, 16, 8

    key = jax.random.PRNGKey(0)
    k1, k2, k3, k4 = jax.random.split(key, 4)

    output = jax.random.normal(k1, (B, C, H, W), dtype=jnp.float32)
    target = jax.random.normal(k2, (B, K, C), dtype=jnp.float32)
    ind = jax.random.randint(k3, (B, K), 0, H * W, dtype=jnp.int32)
    mask = (jax.random.uniform(k4, (B, K)) > 0.3).astype(jnp.float32)

    got = jax.block_until_ready(reg_l1_loss(output, mask, ind, target))
    want = jax.block_until_ready(reg_l1_loss_ref(output, mask, ind, target))

    assert jnp.allclose(got, want, rtol=1e-5, atol=1e-5), (got, want)
    print("KERNEL_OK")
</pallas_src>

<mosaic_0001>
module attributes {stable_mosaic.version = 11 : i64} {
  func.func @_reg_l1_kernel(%arg0: memref<2x32xf32, #tpu.memory_space<vmem>>, %arg1: memref<2x32xf32, #tpu.memory_space<vmem>>, %arg2: memref<2x32xf32, #tpu.memory_space<vmem>>, %arg3: memref<1x1xf32, #tpu.memory_space<vmem>>) attributes {dimension_semantics = [], scalar_prefetch = 0 : i64, scratch_operands = 0 : i64, tpu.core_type = #tpu.core_type<tc>} {
    %c0 = arith.constant 0 : index
    %c0_0 = arith.constant 0 : index
    %0 = vector.load %arg0[%c0, %c0_0] : memref<2x32xf32, #tpu.memory_space<vmem>>, vector<2x32xf32>
    %c0_1 = arith.constant 0 : index
    %c0_2 = arith.constant 0 : index
    %1 = vector.load %arg1[%c0_1, %c0_2] : memref<2x32xf32, #tpu.memory_space<vmem>>, vector<2x32xf32>
    %c0_3 = arith.constant 0 : index
    %c0_4 = arith.constant 0 : index
    %2 = vector.load %arg2[%c0_3, %c0_4] : memref<2x32xf32, #tpu.memory_space<vmem>>, vector<2x32xf32>
    %3 = arith.subf %0, %1 : vector<2x32xf32>
    %4 = math.absf %3 : vector<2x32xf32>
    %5 = arith.mulf %4, %2 : vector<2x32xf32>
    %6 = vector.shape_cast %5 : vector<2x32xf32> to vector<1x2x32xf32>
    %cst = arith.constant dense<0.000000e+00> : vector<1xf32>
    %7 = vector.multi_reduction <add>, %6, %cst [1, 2] : vector<1x2x32xf32> to vector<1xf32>
    %8 = vector.shape_cast %7 : vector<1xf32> to vector<1x1x1xf32>
    %9 = vector.extract %8[0, 0, 0] : f32 from vector<1x1x1xf32>
    %10 = vector.broadcast %9 : f32 to vector<1x1xf32>
    %11 = vector.shape_cast %2 : vector<2x32xf32> to vector<1x2x32xf32>
    %cst_5 = arith.constant dense<0.000000e+00> : vector<1xf32>
    %12 = vector.multi_reduction <add>, %11, %cst_5 [1, 2] : vector<1x2x32xf32> to vector<1xf32>
    %13 = vector.shape_cast %12 : vector<1xf32> to vector<1x1x1xf32>
    %14 = vector.extract %13[0, 0, 0] : f32 from vector<1x1x1xf32>
    %15 = vector.broadcast %14 : f32 to vector<1x1xf32>
    %cst_6 = arith.constant 9.99999974E-5 : f32
    %16 = vector.broadcast %cst_6 : f32 to vector<1x1xf32>
    %17 = arith.addf %15, %16 : vector<1x1xf32>
    %18 = arith.divf %10, %17 : vector<1x1xf32>
    %c0_7 = arith.constant 0 : index
    %c0_8 = arith.constant 0 : index
    %19 = vector.load %arg3[%c0_7, %c0_8] : memref<1x1xf32, #tpu.memory_space<vmem>>, vector<1x1xf32>
    tpu.vector_store %arg3[%c0_7, %c0_8], %18 {strides = array<i32>} : memref<1x1xf32, #tpu.memory_space<vmem>>, vector<1x1xf32>,
    return
  }
}

</mosaic_0001>

<llo_original>
// kernel: tpu_custom_call.1
$region0: #{tpu_custom_call.1}
  #allocation0 [shape = 'u32[]', space=smem, size = 0x4, offset = 0x4, fixed_abs, tag = 'smem constant byte address 0x4 - core index']
  #allocation1 [shape = 'u32[144,128]{1,0:T(1,128)}', space=vmem, size = 0x12000, scoped, tag = 'internal scratch']
  %s0 = inlined_call_operand.hbm [shape: f32[2,32], index: 0, kind: input, shape index: {}]
  %s1 = inlined_call_operand.vmem [shape: f32[2,32], index: 1, kind: input, shape index: {}]
  %s2 = inlined_call_operand.vmem [shape: f32[2,32], index: 2, kind: input, shape index: {}]
  %s3 = inlined_call_operand.hbm [shape: f32[1,1], index: 3, kind: output, shape index: {}]
  %s4 = sld [smem:[#allocation0]]
  $region26: #{tpu_custom_call.1} parent=0
    _
  %s6 = ssub.s32 1, %s4
  %s7 = scalar_select 0, %s6, %s4
  $region1: #{tpu_custom_call.1} parent=0
    #allocation2 [shape = 'u8[1024]{0}', space=vmem, size = 0x400, scoped, tag = 'input window, operand 0, single buffered']
    #allocation3 [shape = 's32[1]{0}', space=sflag, size = 0x4, scoped, tag = 'scoped memory for tpu_custom_call.1']
    #allocation4 [shape = 's32[1]{0}', space=sflag, size = 0x4, scoped, tag = 'scoped memory for tpu_custom_call.1']
    #allocation5 [shape = 'u8[512]{0}', space=vmem, size = 0x400, scoped, tag = 'output window, operand 0, single buffered']
    %8 = vsyncpa [#allocation3], 0
    %9 = vsyncpa [#allocation4], 0
    // Predicated region
    $region2: #{tpu_custom_call.1} parent=1 // pred_check
      _
    $region3: #{tpu_custom_call.1} parent=1 // pred_check_branch
      %11 = sbr.rel (0) target = $region5
    $region4: #{tpu_custom_call.1} parent=1 // pred_region
      %s13 = ssub.s32 32, 32
      %14 = vsyncadd [#allocation3], %s13
      %s16 = sshll.u32 [#allocation2], 4
      %s17 = int_to_ptr.vmem [resolvable:$true] %s16
      %19 = dma.hbm_to_vmem [thread:$0]  %s0, 32, %s17, [#allocation3]
    $region5: #{tpu_custom_call.1} parent=1 // pred_fallthru
      _
    // Predicated region
    $region6: #{tpu_custom_call.1} parent=1 // pred_check
      _
    $region7: #{tpu_custom_call.1} parent=1 // pred_check_branch
      %21 = sbr.rel (0) target = $region9
    $region8: #{tpu_custom_call.1} parent=1 // pred_region
      _
    $region9: #{tpu_custom_call.1} parent=1 // pred_fallthru
      _
    // Predicated region
    $region10: #{tpu_custom_call.1} parent=1 // pred_check
      _
    $region11: #{tpu_custom_call.1} parent=1 // pred_check_branch
      %23 = sbr.rel (0) target = $region13
    $region12: #{tpu_custom_call.1} parent=1 // pred_region
      _
    $region13: #{tpu_custom_call.1} parent=1 // pred_fallthru
      _
    // Predicated region
    $region14: #{tpu_custom_call.1} parent=1 // pred_check
      _
    $region15: #{tpu_custom_call.1} parent=1 // pred_check_branch
      %25 = sbr.rel (0) target = $region17
    $region16: #{tpu_custom_call.1} parent=1 // pred_region
      %26 = dma.done [#allocation3], 32
    $region17: #{tpu_custom_call.1} parent=1 // pred_fallthru
      _
    %v27 = vld [vmem:[#allocation2] sm:$0x3]
    %v28 = vld [vmem:[%s1] sm:$0x3]
    %v29 = vld [vmem:[%s2] sm:$0x3]
    %v30 = vsub.f32 %v27, %v28
    %v31 = vand.u32 2147483647, %v30
    %v32 = vmul.f32 %v31, %v29
    %vm33 = vcmask 254976
    %v34 = vsel %vm33, %v32, 0.0
    %35 = vadd.xlane.f32.xlu0 %v34
    %v36 = vpop.xlane.xlu0 %35
    %v37 = vrot.slane %v36, 4
    %v38 = vadd.f32 %v36, %v37
    %v39 = vrot.slane %v38, 2
    %v40 = vadd.f32 %v38, %v39
    %v41 = vrot.slane %v40, 1
    %v42 = vadd.f32 %v40, %v41
    %s43 = vtos %v42
    %v44 = vstv %s43
    %v45 = vsel %vm33, %v29, 0.0
    %46 = vadd.xlane.f32.xlu0 %v45
    %v47 = vpop.xlane.xlu0 %46
    %v48 = vrot.slane %v47, 4
    %v49 = vadd.f32 %v47, %v48
    %v50 = vrot.slane %v49, 2
    %v51 = vadd.f32 %v49, %v50
    %v52 = vrot.slane %v51, 1
    %v53 = vadd.f32 %v51, %v52
    %s54 = vtos %v53
    %v55 = vstv %s54
    %v56 = vadd.f32 %v55, 0.0001
    %v57 = vrcp.pop %v56
    %v58 = vmul.f32 %v44, %v57
    %vm59 = vcmask 0
    %60 = vst.msk [vmem:[#allocation5] sm:$0x1] %vm59, %v58
    // Predicated region
    $region18: #{tpu_custom_call.1} parent=1 // pred_check
      _
    $region19: #{tpu_custom_call.1} parent=1 // pred_check_branch
      %62 = sbr.rel (0) target = $region21
    $region20: #{tpu_custom_call.1} parent=1 // pred_region
      %s64 = ssub.s32 16, 16
      %65 = vsyncadd [#allocation4], %s64
      %s67 = sshll.u32 [#allocation5], 4
      %s68 = int_to_ptr.vmem [resolvable:$true] %s67
      %70 = dma.vmem_to_hbm [thread:$0]  %s68, 16, %s3, [#allocation4]
    $region21: #{tpu_custom_call.1} parent=1 // pred_fallthru
      _
    // Predicated region
    $region22: #{tpu_custom_call.1} parent=1 // pred_check
      _
    $region23: #{tpu_custom_call.1} parent=1 // pred_check_branch
      %72 = sbr.rel (0) target = $region25
    $region24: #{tpu_custom_call.1} parent=1 // pred_region
      %73 = dma.done [#allocation4], 16
    $region25: #{tpu_custom_call.1} parent=1 // pred_fallthru
      _
    %74 = vsyncpa [#allocation3], 1
    %75 = vsyncpa [#allocation4], 1

</llo_original>
